<compile_context>
chip_gen: v7x
topology: tpu7x:2x2x1
jax: 0.10.0
libtpu: 0.0.40
codegen_flags: <defaults>
</compile_context>

<pallas_src>
import math

import jax
import jax.numpy as jnp
from jax import lax
from jax.experimental import pallas as pl
from jax.experimental.pallas import tpu as pltpu


def _round_up(n, m):
    return ((n + m - 1) // m) * m


def _leaky_relu(v, negative_slope=0.1):
    # max(v, 0.1*v) == LeakyReLU_{0.1}(v) exactly (including v == 0).
    return jnp.maximum(v, negative_slope * v)


def value_network_kernel(x_ref,
                         w1_ref, b1_ref,
                         w2_ref, b2_ref,
                         w3_ref, b3_ref,
                         w4_ref, b4_ref,
                         o_ref):
    """One batch tile: x (TM, in_dim) -> o (1, 1, TM) lane-dense row of values."""
    x = x_ref[...]

    h = jnp.dot(x, w1_ref[...], preferred_element_type=jnp.float32) + b1_ref[...]
    h = _leaky_relu(h).astype(w2_ref.dtype)

    h = jnp.dot(h, w2_ref[...], preferred_element_type=jnp.float32) + b2_ref[...]
    h = _leaky_relu(h).astype(w3_ref.dtype)

    h = jnp.dot(h, w3_ref[...], preferred_element_type=jnp.float32) + b3_ref[...]
    h = _leaky_relu(h).astype(w4_ref.dtype)

    # Final projection: (1, 128) contracted with (TM, 128) on the last dim
    # -> (1, TM).  Lane-dense output row, no masked (TM, 1) partial stores.
    y = lax.dot_general(w4_ref[...], h,
                        dimension_numbers=(((1,), (1,)), ((), ())),
                        preferred_element_type=jnp.float32)
    y = y + b4_ref[0, 0]                               # scalar bias from SMEM
    o_ref[...] = y.reshape(o_ref.shape).astype(o_ref.dtype)


def value_network_forward(x, params, *, tm=256, compute_dtype=jnp.float32):
    """x: (B, in_dim) float32. Returns (B,) float32 — matches y.squeeze(1).

    tm: batch tile (256 fills the v6e/v7x 256-wide MXU; use 128 on v5e).
    compute_dtype: MXU input dtype (jnp.bfloat16 on v6e/v7x if desired);
                   accumulation is always float32.
    """
    w1, b1, w2, b2, w3, b3, w4, b4 = params
    B, in_dim = x.shape
    hidden = w1.shape[1]

    # Clamp the tile for tiny batches; keep it a multiple of 8 sublanes.
    tm = _round_up(max(8, min(tm, _round_up(B, 8))), 8)
    n_tiles = pl.cdiv(B, tm)
    b_pad = n_tiles * tm
    if b_pad != B:
        x = jnp.pad(x, ((0, b_pad - B), (0, 0)))

    cast = lambda a: a.astype(compute_dtype)
    x_c = cast(x)
    w1c, w2c, w3c = cast(w1), cast(w2), cast(w3)
    w4_row = cast(w4.reshape(1, hidden))               # (1, 128), lane-major
    b4_s = b4.reshape(1, 1).astype(jnp.float32)        # scalar for SMEM

    const2d = lambda shape: pl.BlockSpec(shape, lambda i: (0, 0))

    out = pl.pallas_call(
        value_network_kernel,
        out_shape=jax.ShapeDtypeStruct((n_tiles, 1, tm), jnp.float32),
        grid=(n_tiles,),
        in_specs=[
            pl.BlockSpec((tm, in_dim), lambda i: (i, 0)),        # x: batch-tiled
            const2d(w1c.shape), const2d(b1.shape),               # weights/biases
            const2d(w2c.shape), const2d(b2.shape),               #   VMEM-resident
            const2d(w3c.shape), const2d(b3.shape),               #   (constant maps)
            const2d(w4_row.shape),
            pl.BlockSpec(memory_space=pltpu.MemorySpace.SMEM),   # b4 scalar
        ],
        out_specs=pl.BlockSpec((1, 1, tm), lambda i: (i, 0, 0)),
        compiler_params=pltpu.CompilerParams(
            dimension_semantics=("parallel",)),
    )(x_c, w1c, b1, w2c, b2, w3c, b3, w4_row, b4_s)

    return out.reshape(-1)[:B]                         # == y.squeeze(1)


def init_params(key, in_dim=128):
    """Deterministic init mirroring torch.nn.Linear default (U[-1/sqrt(fan_in), +])."""
    def linear(key, fan_in, fan_out):
        kw, kb = jax.random.split(key)
        bound = 1.0 / math.sqrt(fan_in)
        # Stored as (in_features, out_features) — transposed vs PyTorch's (out, in).
        w = jax.random.uniform(kw, (fan_in, fan_out), jnp.float32, -bound, bound)
        b = jax.random.uniform(kb, (1, fan_out), jnp.float32, -bound, bound)
        return w, b

    k1, k2, k3, k4 = jax.random.split(key, 4)
    w1, b1 = linear(k1, in_dim, 128)
    w2, b2 = linear(k2, 128, 128)
    w3, b3 = linear(k3, 128, 128)
    w4, b4 = linear(k4, 128, 1)
    return (w1, b1, w2, b2, w3, b3, w4, b4)


def reference_forward(x, params):
    w1, b1, w2, b2, w3, b3, w4, b4 = params
    h = jax.nn.leaky_relu(x @ w1 + b1, 0.1)
    h = jax.nn.leaky_relu(h @ w2 + b2, 0.1)
    h = jax.nn.leaky_relu(h @ w3 + b3, 0.1)
    y = h @ w4 + b4
    return y[:, 0]


if __name__ == "__main__":
    key = jax.random.PRNGKey(0)
    k_params, k_x1, k_x2 = jax.random.split(key, 3)

    in_dim = 128  # module default (note: real LunarLander obs dim is 8; kernel handles any in_dim)
    params = init_params(k_params, in_dim=in_dim)

    # Small batch (typical PPO rollout micro-batch).
    x_small = jax.random.normal(k_x1, (8, in_dim), jnp.float32)
    y_small = jax.block_until_ready(value_network_forward(x_small, params))
    y_small_ref = reference_forward(x_small, params)
    assert y_small.shape == (8,)
    assert jnp.allclose(y_small, y_small_ref, atol=1e-3, rtol=1e-3)

    # Multi-tile batch with padding (exercises the grid + parallel axis).
    x_big = jax.random.normal(k_x2, (260, in_dim), jnp.float32)
    y_big = jax.block_until_ready(value_network_forward(x_big, params, tm=128))
    y_big_ref = reference_forward(x_big, params)
    assert y_big.shape == (260,)
    assert jnp.allclose(y_big, y_big_ref, atol=1e-3, rtol=1e-3)

    print("KERNEL_OK")
</pallas_src>

<mosaic_0001>
module attributes {stable_mosaic.version = 11 : i64} {
  func.func @value_network_kernel(%arg0: i32, %arg1: memref<8x128xf32, #tpu.memory_space<vmem>>, %arg2: memref<128x128xf32, #tpu.memory_space<vmem>>, %arg3: memref<1x128xf32, #tpu.memory_space<vmem>>, %arg4: memref<128x128xf32, #tpu.memory_space<vmem>>, %arg5: memref<1x128xf32, #tpu.memory_space<vmem>>, %arg6: memref<128x128xf32, #tpu.memory_space<vmem>>, %arg7: memref<1x128xf32, #tpu.memory_space<vmem>>, %arg8: memref<1x128xf32, #tpu.memory_space<vmem>>, %arg9: memref<1x1xf32, #tpu.memory_space<smem>>, %arg10: memref<1x1x8xf32, #tpu.memory_space<vmem>>) attributes {dimension_semantics = [#tpu.dimension_semantics<parallel>], iteration_bounds = array<i64: 1>, scalar_prefetch = 0 : i64, scratch_operands = 0 : i64, tpu.core_type = #tpu.core_type<tc>, window_params = [{transform_indices = @transform_0, window_bounds = array<i64: 8, 128>}, {pipeline_mode = #tpu.pipeline_mode<synchronous>, transform_indices = @transform_1, window_bounds = array<i64: 128, 128>}, {pipeline_mode = #tpu.pipeline_mode<synchronous>, transform_indices = @transform_2, window_bounds = array<i64: 1, 128>}, {pipeline_mode = #tpu.pipeline_mode<synchronous>, transform_indices = @transform_3, window_bounds = array<i64: 128, 128>}, {pipeline_mode = #tpu.pipeline_mode<synchronous>, transform_indices = @transform_4, window_bounds = array<i64: 1, 128>}, {pipeline_mode = #tpu.pipeline_mode<synchronous>, transform_indices = @transform_5, window_bounds = array<i64: 128, 128>}, {pipeline_mode = #tpu.pipeline_mode<synchronous>, transform_indices = @transform_6, window_bounds = array<i64: 1, 128>}, {pipeline_mode = #tpu.pipeline_mode<synchronous>, transform_indices = @transform_7, window_bounds = array<i64: 1, 128>}, {transform_indices = @transform_8, window_bounds = array<i64: 1, 1>}, {transform_indices = @transform_9, window_bounds = array<i64: 1, 1, 8>}]} {
    %c0 = arith.constant 0 : index
    %c0_0 = arith.constant 0 : index
    %0 = vector.load %arg1[%c0, %c0_0] : memref<8x128xf32, #tpu.memory_space<vmem>>, vector<8x128xf32>
    %c0_1 = arith.constant 0 : index
    %c0_2 = arith.constant 0 : index
    %1 = vector.load %arg2[%c0_1, %c0_2] : memref<128x128xf32, #tpu.memory_space<vmem>>, vector<128x128xf32>
    %cst = arith.constant dense<0.000000e+00> : vector<8x128xf32>
    %2 = tpu.matmul %0, %1, %cst {dimension_numbers = #tpu.dot_dimension_numbers<[1], [0], [0], [1], [0, 0, 1, 1], [], []>} : vector<8x128xf32>, vector<128x128xf32>, vector<8x128xf32> -> vector<8x128xf32>
    %c0_3 = arith.constant 0 : index
    %c0_4 = arith.constant 0 : index
    %3 = vector.load %arg3[%c0_3, %c0_4] : memref<1x128xf32, #tpu.memory_space<vmem>>, vector<1x128xf32>
    %4 = vector.broadcast %3 : vector<1x128xf32> to vector<8x128xf32>
    %5 = arith.addf %2, %4 : vector<8x128xf32>
    %cst_5 = arith.constant 1.000000e-01 : f32
    %6 = vector.broadcast %cst_5 : f32 to vector<8x128xf32>
    %7 = arith.mulf %6, %5 : vector<8x128xf32>
    %8 = arith.maximumf %5, %7 : vector<8x128xf32>
    %c0_6 = arith.constant 0 : index
    %c0_7 = arith.constant 0 : index
    %9 = vector.load %arg4[%c0_6, %c0_7] : memref<128x128xf32, #tpu.memory_space<vmem>>, vector<128x128xf32>
    %cst_8 = arith.constant dense<0.000000e+00> : vector<8x128xf32>
    %10 = tpu.matmul %8, %9, %cst_8 {dimension_numbers = #tpu.dot_dimension_numbers<[1], [0], [0], [1], [0, 0, 1, 1], [], []>} : vector<8x128xf32>, vector<128x128xf32>, vector<8x128xf32> -> vector<8x128xf32>
    %c0_9 = arith.constant 0 : index
    %c0_10 = arith.constant 0 : index
    %11 = vector.load %arg5[%c0_9, %c0_10] : memref<1x128xf32, #tpu.memory_space<vmem>>, vector<1x128xf32>
    %12 = vector.broadcast %11 : vector<1x128xf32> to vector<8x128xf32>
    %13 = arith.addf %10, %12 : vector<8x128xf32>
    %cst_11 = arith.constant 1.000000e-01 : f32
    %14 = vector.broadcast %cst_11 : f32 to vector<8x128xf32>
    %15 = arith.mulf %14, %13 : vector<8x128xf32>
    %16 = arith.maximumf %13, %15 : vector<8x128xf32>
    %c0_12 = arith.constant 0 : index
    %c0_13 = arith.constant 0 : index
    %17 = vector.load %arg6[%c0_12, %c0_13] : memref<128x128xf32, #tpu.memory_space<vmem>>, vector<128x128xf32>
    %cst_14 = arith.constant dense<0.000000e+00> : vector<8x128xf32>
    %18 = tpu.matmul %16, %17, %cst_14 {dimension_numbers = #tpu.dot_dimension_numbers<[1], [0], [0], [1], [0, 0, 1, 1], [], []>} : vector<8x128xf32>, vector<128x128xf32>, vector<8x128xf32> -> vector<8x128xf32>
    %c0_15 = arith.constant 0 : index
    %c0_16 = arith.constant 0 : index
    %19 = vector.load %arg7[%c0_15, %c0_16] : memref<1x128xf32, #tpu.memory_space<vmem>>, vector<1x128xf32>
    %20 = vector.broadcast %19 : vector<1x128xf32> to vector<8x128xf32>
    %21 = arith.addf %18, %20 : vector<8x128xf32>
    %cst_17 = arith.constant 1.000000e-01 : f32
    %22 = vector.broadcast %cst_17 : f32 to vector<8x128xf32>
    %23 = arith.mulf %22, %21 : vector<8x128xf32>
    %24 = arith.maximumf %21, %23 : vector<8x128xf32>
    %c0_18 = arith.constant 0 : index
    %c0_19 = arith.constant 0 : index
    %25 = vector.load %arg8[%c0_18, %c0_19] : memref<1x128xf32, #tpu.memory_space<vmem>>, vector<1x128xf32>
    %cst_20 = arith.constant dense<0.000000e+00> : vector<1x8xf32>
    %26 = tpu.matmul %25, %24, %cst_20 {dimension_numbers = #tpu.dot_dimension_numbers<[1], [1], [0], [0], [0, 0, 1, 0], [], []>} : vector<1x128xf32>, vector<8x128xf32>, vector<1x8xf32> -> vector<1x8xf32>
    %c0_21 = arith.constant 0 : index
    %c0_22 = arith.constant 0 : index
    %27 = memref.load %arg9[%c0_21, %c0_22] : memref<1x1xf32, #tpu.memory_space<smem>>
    %28 = vector.broadcast %27 : f32 to vector<1x8xf32>
    %29 = arith.addf %26, %28 : vector<1x8xf32>
    %30 = vector.shape_cast %29 : vector<1x8xf32> to vector<1x1x8xf32>
    %c0_23 = arith.constant 0 : index
    %c0_24 = arith.constant 0 : index
    %c0_25 = arith.constant 0 : index
    %31 = vector.load %arg10[%c0_23, %c0_24, %c0_25] : memref<1x1x8xf32, #tpu.memory_space<vmem>>, vector<1x1x8xf32>
    tpu.vector_store %arg10[%c0_23, %c0_24, %c0_25], %30 {strides = array<i32>} : memref<1x1x8xf32, #tpu.memory_space<vmem>>, vector<1x1x8xf32>,
    return
  }
  func.func @transform_0(%arg0: i32) -> (i32, i32) {
    %c0_i32 = arith.constant 0 : i32
    %c0_i32_0 = arith.constant 0 : i32
    return %arg0, %c0_i32 : i32, i32
  }
  func.func @transform_1(%arg0: i32) -> (i32, i32) {
    %c0_i32 = arith.constant 0 : i32
    %c0_i32_0 = arith.constant 0 : i32
    %c0_i32_1 = arith.constant 0 : i32
    return %c0_i32, %c0_i32_0 : i32, i32
  }
  func.func @transform_2(%arg0: i32) -> (i32, i32) {
    %c0_i32 = arith.constant 0 : i32
    %c0_i32_0 = arith.constant 0 : i32
    %c0_i32_1 = arith.constant 0 : i32
    return %c0_i32, %c0_i32_0 : i32, i32
  }
  func.func @transform_3(%arg0: i32) -> (i32, i32) {
    %c0_i32 = arith.constant 0 : i32
    %c0_i32_0 = arith.constant 0 : i32
    %c0_i32_1 = arith.constant 0 : i32
    return %c0_i32, %c0_i32_0 : i32, i32
  }
  func.func @transform_4(%arg0: i32) -> (i32, i32) {
    %c0_i32 = arith.constant 0 : i32
    %c0_i32_0 = arith.constant 0 : i32
    %c0_i32_1 = arith.constant 0 : i32
    return %c0_i32, %c0_i32_0 : i32, i32
  }
  func.func @transform_5(%arg0: i32) -> (i32, i32) {
    %c0_i32 = arith.constant 0 : i32
    %c0_i32_0 = arith.constant 0 : i32
    %c0_i32_1 = arith.constant 0 : i32
    return %c0_i32, %c0_i32_0 : i32, i32
  }
  func.func @transform_6(%arg0: i32) -> (i32, i32) {
    %c0_i32 = arith.constant 0 : i32
    %c0_i32_0 = arith.constant 0 : i32
    %c0_i32_1 = arith.constant 0 : i32
    return %c0_i32, %c0_i32_0 : i32, i32
  }
  func.func @transform_7(%arg0: i32) -> (i32, i32) {
    %c0_i32 = arith.constant 0 : i32
    %c0_i32_0 = arith.constant 0 : i32
    %c0_i32_1 = arith.constant 0 : i32
    return %c0_i32, %c0_i32_0 : i32, i32
  }
  func.func @transform_8(%arg0: i32) -> (i32, i32) {
    %c0_i32 = arith.constant 0 : i32
    %c0_i32_0 = arith.constant 0 : i32
    %c0_i32_1 = arith.constant 0 : i32
    return %c0_i32, %c0_i32_0 : i32, i32
  }
  func.func @transform_9(%arg0: i32) -> (i32, i32, i32) {
    %c0_i32 = arith.constant 0 : i32
    %c0_i32_0 = arith.constant 0 : i32
    %c0_i32_1 = arith.constant 0 : i32
    return %arg0, %c0_i32, %c0_i32_0 : i32, i32, i32
  }
}

</mosaic_0001>

<llo_original>
// kernel: tpu_custom_call.1
$region0: #{tpu_custom_call.1}
  #allocation0 [shape = 'u32[]', space=smem, size = 0x4, offset = 0x4, fixed_abs, tag = 'smem constant byte address 0x4 - core index']
  #allocation1 [shape = 'u32[144,128]{1,0:T(1,128)}', space=vmem, size = 0x12000, scoped, tag = 'internal scratch']
  #allocation2 [shape = 'f32[1,1]{1,0:T(1,128)S(6)}', space=smem, size = 0x200, scoped, tag = 'scoped memory for tpu_custom_call.1']
  %s0 = inlined_call_operand.hbm [shape: f32[8,128], index: 0, kind: input, shape index: {}]
  %s1 = inlined_call_operand.hbm [shape: f32[128,128], index: 1, kind: input, shape index: {}]
  %s2 = inlined_call_operand.vmem [shape: f32[1,128], index: 2, kind: input, shape index: {}]
  %s3 = inlined_call_operand.hbm [shape: f32[128,128], index: 3, kind: input, shape index: {}]
  %s4 = inlined_call_operand.vmem [shape: f32[1,128], index: 4, kind: input, shape index: {}]
  %s5 = inlined_call_operand.hbm [shape: f32[128,128], index: 5, kind: input, shape index: {}]
  %s6 = inlined_call_operand.vmem [shape: f32[1,128], index: 6, kind: input, shape index: {}]
  %s7 = inlined_call_operand.vmem [shape: f32[1,128], index: 7, kind: input, shape index: {}]
  %s8 = inlined_call_operand.<no memory space> [shape: f32[1,1], index: 8, kind: input, shape index: {}]
  %s9 = inlined_call_operand.hbm [shape: f32[1,1,8], index: 9, kind: output, shape index: {}]
  %s10 = sld [smem:[#allocation0]]
  $region62: #{tpu_custom_call.1} parent=0
    _
  %s12 = ssub.s32 1, %s10
  %s13 = scalar_select 0, %s12, %s10
  %14 = sst [smem:[#allocation2]] %s8
  $region1: #{tpu_custom_call.1} parent=0
    #allocation3 [shape = 'u8[4096]{0}', space=vmem, size = 0x1000, scoped, tag = 'input window, operand 0, single buffered']
    #allocation4 [shape = 's32[1]{0}', space=sflag, size = 0x4, scoped, tag = 'scoped memory for tpu_custom_call.1']
    #allocation5 [shape = 's32[1]{0}', space=sflag, size = 0x4, scoped, tag = 'scoped memory for tpu_custom_call.1']
    #allocation6 [shape = 'u8[65536]{0}', space=vmem, size = 0x10000, scoped, tag = 'input window, operand 1, single buffered']
    #allocation7 [shape = 's32[1]{0}', space=sflag, size = 0x4, scoped, tag = 'scoped memory for tpu_custom_call.1']
    #allocation8 [shape = 'u8[65536]{0}', space=vmem, size = 0x10000, scoped, tag = 'input window, operand 3, single buffered']
    #allocation9 [shape = 'u8[65536]{0}', space=vmem, size = 0x10000, scoped, tag = 'input window, operand 5, single buffered']
    #allocation10 [shape = 's32[1]{0}', space=sflag, size = 0x4, scoped, tag = 'scoped memory for tpu_custom_call.1']
    #allocation11 [shape = 'u8[512]{0}', space=vmem, size = 0x400, scoped, tag = 'output window, operand 0, single buffered']
    %15 = vsyncpa [#allocation4], 0
    %16 = vsyncpa [#allocation7], 0
    %17 = vsyncpa [#allocation10], 0
    %18 = vsyncpa [#allocation5], 0
    // Predicated region
    $region2: #{tpu_custom_call.1} parent=1 // pred_check
      _
    $region3: #{tpu_custom_call.1} parent=1 // pred_check_branch
      %20 = sbr.rel (0) target = $region5
    $region4: #{tpu_custom_call.1} parent=1 // pred_region
      %s22 = ssub.s32 128, 128
      %23 = vsyncadd [#allocation4], %s22
      %s25 = sshll.u32 [#allocation3], 4
      %s26 = int_to_ptr.vmem [resolvable:$true] %s25
      %28 = dma.hbm_to_vmem [thread:$0]  %s0, 128, %s26, [#allocation4]
    $region5: #{tpu_custom_call.1} parent=1 // pred_fallthru
      _
    // Predicated region
    $region6: #{tpu_custom_call.1} parent=1 // pred_check
      _
    $region7: #{tpu_custom_call.1} parent=1 // pred_check_branch
      %30 = sbr.rel (0) target = $region9
    $region8: #{tpu_custom_call.1} parent=1 // pred_region
      %s32 = ssub.s32 2048, 2048
      %33 = vsyncadd [#allocation7], %s32
      %s34 = sshll.u32 [#allocation6], 4
      %s35 = int_to_ptr.vmem [resolvable:$true] %s34
      %40 = dma.hbm_to_vmem [thread:$0]  %s1, 2048, %s35, [#allocation7], 128, 128, 8
    $region9: #{tpu_custom_call.1} parent=1 // pred_fallthru
      _
    // Predicated region
    $region10: #{tpu_custom_call.1} parent=1 // pred_check
      _
    $region11: #{tpu_custom_call.1} parent=1 // pred_check_branch
      %42 = sbr.rel (0) target = $region13
    $region12: #{tpu_custom_call.1} parent=1 // pred_region
      _
    $region13: #{tpu_custom_call.1} parent=1 // pred_fallthru
      _
    // Predicated region
    $region14: #{tpu_custom_call.1} parent=1 // pred_check
      _
    $region15: #{tpu_custom_call.1} parent=1 // pred_check_branch
      %44 = sbr.rel (0) target = $region17
    $region16: #{tpu_custom_call.1} parent=1 // pred_region
      %s46 = ssub.s32 2048, 2048
      %47 = vsyncadd [#allocation7], %s46
      %s48 = sshll.u32 [#allocation8], 4
      %s49 = int_to_ptr.vmem [resolvable:$true] %s48
      %54 = dma.hbm_to_vmem [thread:$0]  %s3, 2048, %s49, [#allocation7], 128, 128, 8
    $region17: #{tpu_custom_call.1} parent=1 // pred_fallthru
      _
    // Predicated region
    $region18: #{tpu_custom_call.1} parent=1 // pred_check
      _
    $region19: #{tpu_custom_call.1} parent=1 // pred_check_branch
      %56 = sbr.rel (0) target = $region21
    $region20: #{tpu_custom_call.1} parent=1 // pred_region
      _
    $region21: #{tpu_custom_call.1} parent=1 // pred_fallthru
      _
    // Predicated region
    $region22: #{tpu_custom_call.1} parent=1 // pred_check
      _
    $region23: #{tpu_custom_call.1} parent=1 // pred_check_branch
      %58 = sbr.rel (0) target = $region25
    $region24: #{tpu_custom_call.1} parent=1 // pred_region
      %s60 = ssub.s32 2048, 2048
      %61 = vsyncadd [#allocation10], %s60
      %s62 = sshll.u32 [#allocation9], 4
      %s63 = int_to_ptr.vmem [resolvable:$true] %s62
      %68 = dma.hbm_to_vmem [thread:$0]  %s5, 2048, %s63, [#allocation10], 128, 128, 8
    $region25: #{tpu_custom_call.1} parent=1 // pred_fallthru
      _
    // Predicated region
    $region26: #{tpu_custom_call.1} parent=1 // pred_check
      _
    $region27: #{tpu_custom_call.1} parent=1 // pred_check_branch
      %70 = sbr.rel (0) target = $region29
    $region28: #{tpu_custom_call.1} parent=1 // pred_region
      _
    $region29: #{tpu_custom_call.1} parent=1 // pred_fallthru
      _
    // Predicated region
    $region30: #{tpu_custom_call.1} parent=1 // pred_check
      _
    $region31: #{tpu_custom_call.1} parent=1 // pred_check_branch
      %72 = sbr.rel (0) target = $region33
    $region32: #{tpu_custom_call.1} parent=1 // pred_region
      _
    $region33: #{tpu_custom_call.1} parent=1 // pred_fallthru
      _
    // Predicated region
    $region34: #{tpu_custom_call.1} parent=1 // pred_check
      _
    $region35: #{tpu_custom_call.1} parent=1 // pred_check_branch
      %74 = sbr.rel (0) target = $region37
    $region36: #{tpu_custom_call.1} parent=1 // pred_region
      _
    $region37: #{tpu_custom_call.1} parent=1 // pred_fallthru
      _
    // Predicated region
    $region38: #{tpu_custom_call.1} parent=1 // pred_check
      _
    $region39: #{tpu_custom_call.1} parent=1 // pred_check_branch
      %76 = sbr.rel (0) target = $region41
    $region40: #{tpu_custom_call.1} parent=1 // pred_region
      %77 = dma.done [#allocation4], 128
    $region41: #{tpu_custom_call.1} parent=1 // pred_fallthru
      _
    // Predicated region
    $region42: #{tpu_custom_call.1} parent=1 // pred_check
      _
    $region43: #{tpu_custom_call.1} parent=1 // pred_check_branch
      %79 = sbr.rel (0) target = $region45
    $region44: #{tpu_custom_call.1} parent=1 // pred_region
      %80 = dma.done [#allocation7], 2048
    $region45: #{tpu_custom_call.1} parent=1 // pred_fallthru
      _
    // Predicated region
    $region46: #{tpu_custom_call.1} parent=1 // pred_check
      _
    $region47: #{tpu_custom_call.1} parent=1 // pred_check_branch
      %82 = sbr.rel (0) target = $region49
    $region48: #{tpu_custom_call.1} parent=1 // pred_region
      %83 = dma.done [#allocation7], 2048
    $region49: #{tpu_custom_call.1} parent=1 // pred_fallthru
      _
    // Predicated region
    $region50: #{tpu_custom_call.1} parent=1 // pred_check
      _
    $region51: #{tpu_custom_call.1} parent=1 // pred_check_branch
      %85 = sbr.rel (0) target = $region53
    $region52: #{tpu_custom_call.1} parent=1 // pred_region
      %86 = dma.done [#allocation10], 2048
    $region53: #{tpu_custom_call.1} parent=1 // pred_fallthru
      _
    %v87 = vld [vmem:[#allocation3] sm:$0xff]
    %v88 = vld [vmem:[#allocation6] sm:$0xff]
    %v89 = vld [vmem:[#allocation6 + $0x8] sm:$0xff]
    %v90 = vld [vmem:[#allocation6 + $0x10] sm:$0xff]
    %v91 = vld [vmem:[#allocation6 + $0x18] sm:$0xff]
    %v92 = vld [vmem:[#allocation6 + $0x20] sm:$0xff]
    %v93 = vld [vmem:[#allocation6 + $0x28] sm:$0xff]
    %v94 = vld [vmem:[#allocation6 + $0x30] sm:$0xff]
    %v95 = vld [vmem:[#allocation6 + $0x38] sm:$0xff]
    %v96 = vld [vmem:[#allocation6 + $0x40] sm:$0xff]
    %v97 = vld [vmem:[#allocation6 + $0x48] sm:$0xff]
    %v98 = vld [vmem:[#allocation6 + $0x50] sm:$0xff]
    %v99 = vld [vmem:[#allocation6 + $0x58] sm:$0xff]
    %v100 = vld [vmem:[#allocation6 + $0x60] sm:$0xff]
    %v101 = vld [vmem:[#allocation6 + $0x68] sm:$0xff]
    %v102 = vld [vmem:[#allocation6 + $0x70] sm:$0xff]
    %v103 = vld [vmem:[#allocation6 + $0x78] sm:$0xff]
    %v104 = vld [vmem:[%s2] sm:$0x1]
    %v106 = vlaneseq
    %v107 = vshrl.u32 %v106, 7
    %v108 = vsub.s32 0, %v107
    %v109 = vrot.slane %v104, %v108
    %111 = vmatprep.subr.mxu0 0.0
    %112 = vmatpush1.msra.mxu0 %v88
    %113 = vmatprep.subr.mxu0 0.0
    %114 = vmatpush1.msra.mxu0 %v89
    %115 = vmatprep.subr.mxu0 0.0
    %116 = vmatpush1.msra.mxu0 %v90
    %117 = vmatprep.subr.mxu0 0.0
    %118 = vmatpush1.msra.mxu0 %v91
    %119 = vmatprep.subr.mxu0 0.0
    %120 = vmatpush1.msra.mxu0 %v92
    %121 = vmatprep.subr.mxu0 0.0
    %122 = vmatpush1.msra.mxu0 %v93
    %123 = vmatprep.subr.mxu0 0.0
    %124 = vmatpush1.msra.mxu0 %v94
    %125 = vmatprep.subr.mxu0 0.0
    %126 = vmatpush1.msra.mxu0 %v95
    %127 = vmatprep.subr.mxu0 0.0
    %128 = vmatpush1.msra.mxu0 %v96
    %129 = vmatprep.subr.mxu0 0.0
    %130 = vmatpush1.msra.mxu0 %v97
    %131 = vmatprep.subr.mxu0 0.0
    %132 = vmatpush1.msra.mxu0 %v98
    %133 = vmatprep.subr.mxu0 0.0
    %134 = vmatpush1.msra.mxu0 %v99
    %135 = vmatprep.subr.mxu0 0.0
    %136 = vmatpush1.msra.mxu0 %v100
    %137 = vmatprep.subr.mxu0 0.0
    %138 = vmatpush1.msra.mxu0 %v101
    %139 = vmatprep.subr.mxu0 0.0
    %140 = vmatpush1.msra.mxu0 %v102
    %141 = vmatprep.subr.mxu0 0.0
    %142 = vmatpush1.msra.mxu0 %v103
    %143 = vmatprep.subr.mxu0 0.0
    %144 = vmatpush1.msra.mxu0 0.0
    %145 = vmatprep.subr.mxu0 0.0
    %146 = vmatpush1.msra.mxu0 0.0
    %147 = vmatprep.subr.mxu0 0.0
    %148 = vmatpush1.msra.mxu0 0.0
    %149 = vmatprep.subr.mxu0 0.0
    %150 = vmatpush1.msra.mxu0 0.0
    %151 = vmatprep.subr.mxu0 0.0
    %152 = vmatpush1.msra.mxu0 0.0
    %153 = vmatprep.subr.mxu0 0.0
    %154 = vmatpush1.msra.mxu0 0.0
    %155 = vmatprep.subr.mxu0 0.0
    %156 = vmatpush1.msra.mxu0 0.0
    %157 = vmatprep.subr.mxu0 0.0
    %158 = vmatpush1.msra.mxu0 0.0
    %159 = vmatprep.subr.mxu0 0.0
    %160 = vmatpush1.msra.mxu0 0.0
    %161 = vmatprep.subr.mxu0 0.0
    %162 = vmatpush1.msra.mxu0 0.0
    %163 = vmatprep.subr.mxu0 0.0
    %164 = vmatpush1.msra.mxu0 0.0
    %165 = vmatprep.subr.mxu0 0.0
    %166 = vmatpush1.msra.mxu0 0.0
    %167 = vmatprep.subr.mxu0 0.0
    %168 = vmatpush1.msra.mxu0 0.0
    %169 = vmatprep.subr.mxu0 0.0
    %170 = vmatpush1.msra.mxu0 0.0
    %171 = vmatprep.subr.mxu0 0.0
    %172 = vmatpush1.msra.mxu0 0.0
    %173 = vmatprep.subr.mxu0 0.0
    %174 = vmatpush1.msra.mxu0 0.0
    %175 = vmatprep.mubr.f32.mxu0 0.0
    %176 = vmatmul.mubr.f32.gmra.mrb[0].mxu0 %v87
    %v177 = vpop.f32.mrb[0].mxu0
    %v178 = vadd.f32 %v109, %v177
    %v179 = vpop.f32.mrb[0].mxu0
    %180 = vdwg.mxu0
    %v181 = vmul.f32 %v178, 0.1
    %v182 = vmax.f32 %v178, %v181
    %v183 = vld [vmem:[#allocation8] sm:$0xff]
    %v184 = vld [vmem:[#allocation8 + $0x8] sm:$0xff]
    %v185 = vld [vmem:[#allocation8 + $0x10] sm:$0xff]
    %v186 = vld [vmem:[#allocation8 + $0x18] sm:$0xff]
    %v187 = vld [vmem:[#allocation8 + $0x20] sm:$0xff]
    %v188 = vld [vmem:[#allocation8 + $0x28] sm:$0xff]
    %v189 = vld [vmem:[#allocation8 + $0x30] sm:$0xff]
    %v190 = vld [vmem:[#allocation8 + $0x38] sm:$0xff]
    %v191 = vld [vmem:[#allocation8 + $0x40] sm:$0xff]
    %v192 = vld [vmem:[#allocation8 + $0x48] sm:$0xff]
    %v193 = vld [vmem:[#allocation8 + $0x50] sm:$0xff]
    %v194 = vld [vmem:[#allocation8 + $0x58] sm:$0xff]
    %v195 = vld [vmem:[#allocation8 + $0x60] sm:$0xff]
    %v196 = vld [vmem:[#allocation8 + $0x68] sm:$0xff]
    %v197 = vld [vmem:[#allocation8 + $0x70] sm:$0xff]
    %v198 = vld [vmem:[#allocation8 + $0x78] sm:$0xff]
    %v199 = vld [vmem:[%s4] sm:$0x1]
    %v201 = vlaneseq
    %v202 = vshrl.u32 %v201, 7
    %v203 = vsub.s32 0, %v202
    %v204 = vrot.slane %v199, %v203
    %206 = vmatprep.subr.mxu0 0.0
    %207 = vmatpush1.msra.mxu0 %v183
    %208 = vmatprep.subr.mxu0 0.0
    %209 = vmatpush1.msra.mxu0 %v184
    %210 = vmatprep.subr.mxu0 0.0
    %211 = vmatpush1.msra.mxu0 %v185
    %212 = vmatprep.subr.mxu0 0.0
    %213 = vmatpush1.msra.mxu0 %v186
    %214 = vmatprep.subr.mxu0 0.0
    %215 = vmatpush1.msra.mxu0 %v187
    %216 = vmatprep.subr.mxu0 0.0
    %217 = vmatpush1.msra.mxu0 %v188
    %218 = vmatprep.subr.mxu0 0.0
    %219 = vmatpush1.msra.mxu0 %v189
    %220 = vmatprep.subr.mxu0 0.0
    %221 = vmatpush1.msra.mxu0 %v190
    %222 = vmatprep.subr.mxu0 0.0
    %223 = vmatpush1.msra.mxu0 %v191
    %224 = vmatprep.subr.mxu0 0.0
    %225 = vmatpush1.msra.mxu0 %v192
    %226 = vmatprep.subr.mxu0 0.0
    %227 = vmatpush1.msra.mxu0 %v193
    %228 = vmatprep.subr.mxu0 0.0
    %229 = vmatpush1.msra.mxu0 %v194
    %230 = vmatprep.subr.mxu0 0.0
    %231 = vmatpush1.msra.mxu0 %v195
    %232 = vmatprep.subr.mxu0 0.0
    %233 = vmatpush1.msra.mxu0 %v196
    %234 = vmatprep.subr.mxu0 0.0
    %235 = vmatpush1.msra.mxu0 %v197
    %236 = vmatprep.subr.mxu0 0.0
    %237 = vmatpush1.msra.mxu0 %v198
    %238 = vmatprep.subr.mxu0 0.0
    %239 = vmatpush1.msra.mxu0 0.0
    %240 = vmatprep.subr.mxu0 0.0
    %241 = vmatpush1.msra.mxu0 0.0
    %242 = vmatprep.subr.mxu0 0.0
    %243 = vmatpush1.msra.mxu0 0.0
    %244 = vmatprep.subr.mxu0 0.0
    %245 = vmatpush1.msra.mxu0 0.0
    %246 = vmatprep.subr.mxu0 0.0
    %247 = vmatpush1.msra.mxu0 0.0
    %248 = vmatprep.subr.mxu0 0.0
    %249 = vmatpush1.msra.mxu0 0.0
    %250 = vmatprep.subr.mxu0 0.0
    %251 = vmatpush1.msra.mxu0 0.0
    %252 = vmatprep.subr.mxu0 0.0
    %253 = vmatpush1.msra.mxu0 0.0
    %254 = vmatprep.subr.mxu0 0.0
    %255 = vmatpush1.msra.mxu0 0.0
    %256 = vmatprep.subr.mxu0 0.0
    %257 = vmatpush1.msra.mxu0 0.0
    %258 = vmatprep.subr.mxu0 0.0
    %259 = vmatpush1.msra.mxu0 0.0
    %260 = vmatprep.subr.mxu0 0.0
    %261 = vmatpush1.msra.mxu0 0.0
    %262 = vmatprep.subr.mxu0 0.0
    %263 = vmatpush1.msra.mxu0 0.0
    %264 = vmatprep.subr.mxu0 0.0
    %265 = vmatpush1.msra.mxu0 0.0
    %266 = vmatprep.subr.mxu0 0.0
    %267 = vmatpush1.msra.mxu0 0.0
    %268 = vmatprep.subr.mxu0 0.0
    %269 = vmatpush1.msra.mxu0 0.0
    %270 = vmatprep.mubr.f32.mxu0 0.0
    %271 = vmatmul.mubr.f32.gmra.mrb[0].mxu0 %v182
    %v272 = vpop.f32.mrb[0].mxu0
    %v273 = vadd.f32 %v204, %v272
    %v274 = vpop.f32.mrb[0].mxu0
    %275 = vdwg.mxu0
    %v276 = vmul.f32 %v273, 0.1
    %v277 = vmax.f32 %v273, %v276
    %v278 = vld [vmem:[#allocation9] sm:$0xff]
    %v279 = vld [vmem:[#allocation9 + $0x8] sm:$0xff]
    %v280 = vld [vmem:[#allocation9 + $0x10] sm:$0xff]
    %v281 = vld [vmem:[#allocation9 + $0x18] sm:$0xff]
    %v282 = vld [vmem:[#allocation9 + $0x20] sm:$0xff]
    %v283 = vld [vmem:[#allocation9 + $0x28] sm:$0xff]
    %v284 = vld [vmem:[#allocation9 + $0x30] sm:$0xff]
    %v285 = vld [vmem:[#allocation9 + $0x38] sm:$0xff]
    %v286 = vld [vmem:[#allocation9 + $0x40] sm:$0xff]
    %v287 = vld [vmem:[#allocation9 + $0x48] sm:$0xff]
    %v288 = vld [vmem:[#allocation9 + $0x50] sm:$0xff]
    %v289 = vld [vmem:[#allocation9 + $0x58] sm:$0xff]
    %v290 = vld [vmem:[#allocation9 + $0x60] sm:$0xff]
    %v291 = vld [vmem:[#allocation9 + $0x68] sm:$0xff]
    %v292 = vld [vmem:[#allocation9 + $0x70] sm:$0xff]
    %v293 = vld [vmem:[#allocation9 + $0x78] sm:$0xff]
    %v294 = vld [vmem:[%s6] sm:$0x1]
    %v296 = vlaneseq
    %v297 = vshrl.u32 %v296, 7
    %v298 = vsub.s32 0, %v297
    %v299 = vrot.slane %v294, %v298
    %301 = vmatprep.subr.mxu0 0.0
    %302 = vmatpush1.msra.mxu0 %v278
    %303 = vmatprep.subr.mxu0 0.0
    %304 = vmatpush1.msra.mxu0 %v279
    %305 = vmatprep.subr.mxu0 0.0
    %306 = vmatpush1.msra.mxu0 %v280
    %307 = vmatprep.subr.mxu0 0.0
    %308 = vmatpush1.msra.mxu0 %v281
    %309 = vmatprep.subr.mxu0 0.0
    %310 = vmatpush1.msra.mxu0 %v282
    %311 = vmatprep.subr.mxu0 0.0
    %312 = vmatpush1.msra.mxu0 %v283
    %313 = vmatprep.subr.mxu0 0.0
    %314 = vmatpush1.msra.mxu0 %v284
    %315 = vmatprep.subr.mxu0 0.0
    %316 = vmatpush1.msra.mxu0 %v285
    %317 = vmatprep.subr.mxu0 0.0
    %318 = vmatpush1.msra.mxu0 %v286
    %319 = vmatprep.subr.mxu0 0.0
    %320 = vmatpush1.msra.mxu0 %v287
    %321 = vmatprep.subr.mxu0 0.0
    %322 = vmatpush1.msra.mxu0 %v288
    %323 = vmatprep.subr.mxu0 0.0
    %324 = vmatpush1.msra.mxu0 %v289
    %325 = vmatprep.subr.mxu0 0.0
    %326 = vmatpush1.msra.mxu0 %v290
    %327 = vmatprep.subr.mxu0 0.0
    %328 = vmatpush1.msra.mxu0 %v291
    %329 = vmatprep.subr.mxu0 0.0
    %330 = vmatpush1.msra.mxu0 %v292
    %331 = vmatprep.subr.mxu0 0.0
    %332 = vmatpush1.msra.mxu0 %v293
    %333 = vmatprep.subr.mxu0 0.0
    %334 = vmatpush1.msra.mxu0 0.0
    %335 = vmatprep.subr.mxu0 0.0
    %336 = vmatpush1.msra.mxu0 0.0
    %337 = vmatprep.subr.mxu0 0.0
    %338 = vmatpush1.msra.mxu0 0.0
    %339 = vmatprep.subr.mxu0 0.0
    %340 = vmatpush1.msra.mxu0 0.0
    %341 = vmatprep.subr.mxu0 0.0
    %342 = vmatpush1.msra.mxu0 0.0
    %343 = vmatprep.subr.mxu0 0.0
    %344 = vmatpush1.msra.mxu0 0.0
    %345 = vmatprep.subr.mxu0 0.0
    %346 = vmatpush1.msra.mxu0 0.0
    %347 = vmatprep.subr.mxu0 0.0
    %348 = vmatpush1.msra.mxu0 0.0
    %349 = vmatprep.subr.mxu0 0.0
    %350 = vmatpush1.msra.mxu0 0.0
    %351 = vmatprep.subr.mxu0 0.0
    %352 = vmatpush1.msra.mxu0 0.0
    %353 = vmatprep.subr.mxu0 0.0
    %354 = vmatpush1.msra.mxu0 0.0
    %355 = vmatprep.subr.mxu0 0.0
    %356 = vmatpush1.msra.mxu0 0.0
    %357 = vmatprep.subr.mxu0 0.0
    %358 = vmatpush1.msra.mxu0 0.0
    %359 = vmatprep.subr.mxu0 0.0
    %360 = vmatpush1.msra.mxu0 0.0
    %361 = vmatprep.subr.mxu0 0.0
    %362 = vmatpush1.msra.mxu0 0.0
    %363 = vmatprep.subr.mxu0 0.0
    %364 = vmatpush1.msra.mxu0 0.0
    %365 = vmatprep.mubr.f32.mxu0 0.0
    %366 = vmatmul.mubr.f32.gmra.mrb[0].mxu0 %v277
    %v367 = vpop.f32.mrb[0].mxu0
    %v368 = vadd.f32 %v299, %v367
    %v369 = vpop.f32.mrb[0].mxu0
    %370 = vdwg.mxu0
    %v371 = vmul.f32 %v368, 0.1
    %v372 = vmax.f32 %v368, %v371
    %v373 = vld [vmem:[%s7] sm:$0x1]
    %s374 = sld [smem:[#allocation2]]
    %v375 = vstv %s374
    %376 = vmatprep.subr.mxu0 0.0
    %377 = vmatpush1.xpose.msra.mxu0 %v372
    %378 = vmatprep.subr.mxu0 0.0
    %379 = vmatpush1.xpose.msra.mxu0 0.0
    %380 = vmatprep.subr.mxu0 0.0
    %381 = vmatpush1.xpose.msra.mxu0 0.0
    %382 = vmatprep.subr.mxu0 0.0
    %383 = vmatpush1.xpose.msra.mxu0 0.0
    %384 = vmatprep.subr.mxu0 0.0
    %385 = vmatpush1.xpose.msra.mxu0 0.0
    %386 = vmatprep.subr.mxu0 0.0
    %387 = vmatpush1.xpose.msra.mxu0 0.0
    %388 = vmatprep.subr.mxu0 0.0
    %389 = vmatpush1.xpose.msra.mxu0 0.0
    %390 = vmatprep.subr.mxu0 0.0
    %391 = vmatpush1.xpose.msra.mxu0 0.0
    %392 = vmatprep.subr.mxu0 0.0
    %393 = vmatpush1.xpose.msra.mxu0 0.0
    %394 = vmatprep.subr.mxu0 0.0
    %395 = vmatpush1.xpose.msra.mxu0 0.0
    %396 = vmatprep.subr.mxu0 0.0
    %397 = vmatpush1.xpose.msra.mxu0 0.0
    %398 = vmatprep.subr.mxu0 0.0
    %399 = vmatpush1.xpose.msra.mxu0 0.0
    %400 = vmatprep.subr.mxu0 0.0
    %401 = vmatpush1.xpose.msra.mxu0 0.0
    %402 = vmatprep.subr.mxu0 0.0
    %403 = vmatpush1.xpose.msra.mxu0 0.0
    %404 = vmatprep.subr.mxu0 0.0
    %405 = vmatpush1.xpose.msra.mxu0 0.0
    %406 = vmatprep.subr.mxu0 0.0
    %407 = vmatpush1.xpose.msra.mxu0 0.0
    %408 = vmatprep.subr.mxu0 0.0
    %409 = vmatpush1.xpose.msra.mxu0 0.0
    %410 = vmatprep.subr.mxu0 0.0
    %411 = vmatpush1.xpose.msra.mxu0 0.0
    %412 = vmatprep.subr.mxu0 0.0
    %413 = vmatpush1.xpose.msra.mxu0 0.0
    %414 = vmatprep.subr.mxu0 0.0
    %415 = vmatpush1.xpose.msra.mxu0 0.0
    %416 = vmatprep.subr.mxu0 0.0
    %417 = vmatpush1.xpose.msra.mxu0 0.0
    %418 = vmatprep.subr.mxu0 0.0
    %419 = vmatpush1.xpose.msra.mxu0 0.0
    %420 = vmatprep.subr.mxu0 0.0
    %421 = vmatpush1.xpose.msra.mxu0 0.0
    %422 = vmatprep.subr.mxu0 0.0
    %423 = vmatpush1.xpose.msra.mxu0 0.0
    %424 = vmatprep.subr.mxu0 0.0
    %425 = vmatpush1.xpose.msra.mxu0 0.0
    %426 = vmatprep.subr.mxu0 0.0
    %427 = vmatpush1.xpose.msra.mxu0 0.0
    %428 = vmatprep.subr.mxu0 0.0
    %429 = vmatpush1.xpose.msra.mxu0 0.0
    %430 = vmatprep.subr.mxu0 0.0
    %431 = vmatpush1.xpose.msra.mxu0 0.0
    %432 = vmatprep.subr.mxu0 0.0
    %433 = vmatpush1.xpose.msra.mxu0 0.0
    %434 = vmatprep.subr.mxu0 0.0
    %435 = vmatpush1.xpose.msra.mxu0 0.0
    %436 = vmatprep.subr.mxu0 0.0
    %437 = vmatpush1.xpose.msra.mxu0 0.0
    %438 = vmatprep.subr.mxu0 0.0
    %439 = vmatpush1.xpose.msra.mxu0 0.0
    %440 = vmatprep.mubr.f32.mxu0 0.0
    %441 = vmatmul.mubr.f32.gmra.mrb[0].mxu0 %v373
    %v442 = vpop.f32.mrb[0].mxu0
    %v443 = vadd.f32 %v375, %v442
    %v444 = vpop.f32.mrb[0].mxu0
    %445 = vdwg.mxu0
    %vm446 = vcmask 57344
    %447 = vst.msk [vmem:[#allocation11] sm:$0x1] %vm446, %v443
    // Predicated region
    $region54: #{tpu_custom_call.1} parent=1 // pred_check
      _
    $region55: #{tpu_custom_call.1} parent=1 // pred_check_branch
      %449 = sbr.rel (0) target = $region57
    $region56: #{tpu_custom_call.1} parent=1 // pred_region
      %s451 = ssub.s32 16, 16
      %452 = vsyncadd [#allocation5], %s451
      %s454 = sshll.u32 [#allocation11], 4
      %s455 = int_to_ptr.vmem [resolvable:$true] %s454
      %457 = dma.vmem_to_hbm [thread:$0]  %s455, 16, %s9, [#allocation5]
    $region57: #{tpu_custom_call.1} parent=1 // pred_fallthru
      _
    // Predicated region
    $region58: #{tpu_custom_call.1} parent=1 // pred_check
      _
    $region59: #{tpu_custom_call.1} parent=1 // pred_check_branch
      %459 = sbr.rel (0) target = $region61
    $region60: #{tpu_custom_call.1} parent=1 // pred_region
      %460 = dma.done [#allocation5], 16
    $region61: #{tpu_custom_call.1} parent=1 // pred_fallthru
      _
    %461 = vsyncpa [#allocation4], 1
    %462 = vsyncpa [#allocation7], 1
    %463 = vsyncpa [#allocation10], 1
    %464 = vsyncpa [#allocation5], 1

</llo_original>
